<compile_context>
chip_gen: v7x
topology: tpu7x:2x2x1
jax: 0.10.0
libtpu: 0.0.40
codegen_flags: <defaults>
</compile_context>

<pallas_src>
import functools

import jax
import jax.numpy as jnp
from jax import lax
from jax.experimental import pallas as pl
from jax.experimental.pallas import tpu as pltpu


def _round_up(v, m):
    return ((v + m - 1) // m) * m


def _pick_bt(B):
    # Prefer sublane-aligned batch tiles that divide B and leave >=2 blocks on the
    # parallel grid axis (keeps both TensorCores busy on v7x) while being large
    # enough to amortize per-grid-step overhead and feed the MXU epilogue.
    for bt in (32, 24, 16, 8):
        if B % bt == 0 and B // bt >= 2:
            return bt
    if B <= 32:
        return B          # single block of the whole (small) batch
    return 8              # awkward large batch: 8-row tiles, last block partial


def head_kernel(x_ref, w_ref, o_ref, acc_ref, *, inv_hw, hw_total, hw_tile,
                needs_mask, slab):
    """x_ref: [bt, hw_tile, C_pad] VMEM; w_ref: [OUT_pad, C_pad] VMEM (PyTorch layout);
    o_ref: [bt, OUT_pad]; acc_ref: [bt, 8 or 1, C_pad] f32 scratch."""
    hw_i = pl.program_id(1)

    @pl.when(hw_i == 0)
    def _():
        acc_ref[...] = jnp.zeros_like(acc_ref)

    x = x_ref[...].astype(jnp.float32)                 # [bt, hw_tile, C_pad]
    if needs_mask:
        # Ragged HW tail: out-of-bounds rows of the last chunk are garbage in VMEM;
        # zero them with a sublane-iota mask (select, so NaN garbage is also killed).
        start = hw_i * hw_tile
        row = lax.broadcasted_iota(jnp.int32, (1, hw_tile, 1), 1)
        x = jnp.where(start + row < hw_total, x, 0.0)

    bt, _, c = x.shape
    if slab:
        # Pure VPU adds of the chunk's 8-sublane slabs into the resident accumulator;
        # the lone 8->1 cross-sublane (XLU) reduce happens once in the epilogue.
        acc_ref[...] += x.reshape(bt, hw_tile // 8, 8, c).sum(axis=1)
    else:
        acc_ref[...] += x.sum(axis=1, keepdims=True)

    @pl.when(hw_i == pl.num_programs(1) - 1)
    def _():
        pooled = acc_ref[...].sum(axis=1)              # [bt, C_pad] channel sums (f32)
        # Linear(in_dim, out_dim, bias=False), PyTorch weight layout [OUT, C]:
        # contract over C of both operands (transposed RHS is native on the MXU).
        y = lax.dot_general(
            pooled, w_ref[...],
            dimension_numbers=(((1,), (1,)), ((), ())),
            preferred_element_type=jnp.float32,
        )                                              # [bt, OUT_pad]
        # Fold the 1/HW average into the tiny epilogue result.
        o_ref[...] = (y * inv_hw).astype(o_ref.dtype)


def classifier_head(x, weight, *, max_x_tile_bytes=6 << 20,
                    vmem_limit_bytes=48 << 20):
    """Global average pool + bias-free Linear.

    x:      [B, H, W, C] or [B, HW, C] channels-last backbone features (f32 / bf16).
    weight: [out_dim, in_dim] PyTorch nn.Linear layout.
    """
    if x.ndim == 4:
        B, H, W, C = x.shape
        x = x.reshape(B, H * W, C)        # free: collapses contiguous dims
    B, HW, C = x.shape
    out_dim, in_dim = weight.shape
    assert in_dim == C, "Linear in_dim must equal channel count"

    C_pad = _round_up(C, 128)             # lane-dense channels
    OUT_pad = _round_up(out_dim, 128)      # lane-dense output stores

    bt = _pick_bt(B)

    # HW chunk: as large as fits the per-buffer VMEM budget (multiple of 8 sublanes).
    itemsize = jnp.dtype(x.dtype).itemsize
    max_rows = max_x_tile_bytes // (bt * C_pad * itemsize)
    max_rows = max(8, (max_rows // 8) * 8)
    if HW <= max_rows:
        hw_tile, n_steps = HW, 1
    else:
        n_steps = -(-HW // max_rows)
        hw_tile = _round_up(-(-HW // n_steps), 8)
        n_steps = -(-HW // hw_tile)

    needs_mask = (n_steps * hw_tile != HW)     # ragged last HW chunk -> in-kernel mask
    slab = (hw_tile % 8 == 0)
    nsub = 8 if slab else 1

    # C is already 128-aligned for real backbones (1024 / 2048); these pads are
    # no-ops there and only trigger for toy channel counts.
    if C_pad != C:
        x = jnp.pad(x, ((0, 0), (0, 0), (0, C_pad - C)))
    w_p = weight
    if OUT_pad != out_dim or C_pad != C:
        w_p = jnp.pad(weight, ((0, OUT_pad - out_dim), (0, C_pad - C)))

    grid = (-(-B // bt), n_steps)              # (batch tiles, HW chunks)

    kernel = functools.partial(
        head_kernel, inv_hw=1.0 / float(HW), hw_total=HW, hw_tile=hw_tile,
        needs_mask=needs_mask, slab=slab)

    cost = pl.CostEstimate(
        flops=B * HW * C + 2 * B * C * out_dim,
        transcendentals=0,
        bytes_accessed=(B * HW * C_pad * itemsize
                        + OUT_pad * C_pad * jnp.dtype(weight.dtype).itemsize
                        + B * OUT_pad * 4),
    )

    def build(single_buffer_weight):
        if single_buffer_weight:
            # Constant index_map -> never re-fetched; single-buffer it to save VMEM.
            w_spec = pl.BlockSpec((OUT_pad, C_pad), lambda b, h: (0, 0),
                                  pipeline_mode=pl.Buffered(1))
        else:
            w_spec = pl.BlockSpec((OUT_pad, C_pad), lambda b, h: (0, 0))
        return pl.pallas_call(
            kernel,
            out_shape=jax.ShapeDtypeStruct((B, OUT_pad), jnp.float32),
            grid_spec=pltpu.PrefetchScalarGridSpec(
                num_scalar_prefetch=0,
                grid=grid,
                in_specs=[
                    pl.BlockSpec((bt, hw_tile, C_pad), lambda b, h: (b, h, 0)),
                    w_spec,
                ],
                out_specs=pl.BlockSpec((bt, OUT_pad), lambda b, h: (b, 0)),
                scratch_shapes=[pltpu.VMEM((bt, nsub, C_pad), jnp.float32)],
            ),
            compiler_params=pltpu.CompilerParams(
                dimension_semantics=("parallel", "arbitrary"),
                vmem_limit_bytes=vmem_limit_bytes,
            ),
            cost_estimate=cost,
        )

    try:
        out_padded = build(True)(x, w_p)
    except Exception:
        # pipeline_mode / Buffered(1) not supported by this JAX build -> default spec.
        out_padded = build(False)(x, w_p)

    return out_padded[:, :out_dim]


def reference_head(x_nhwc, weight):
    B, C = x_nhwc.shape[0], x_nhwc.shape[-1]
    pooled = jnp.mean(x_nhwc.astype(jnp.float32).reshape(B, -1, C), axis=1)  # [B, C]
    return pooled @ weight.T.astype(jnp.float32)                             # [B, out]


if __name__ == "__main__":
    key = jax.random.PRNGKey(0)
    kx, kw, kx2 = jax.random.split(key, 3)

    # Small shapes consistent with the head: batch=2, channels (in_dim)=32,
    # spatial=16x16 features (channels-last), class_num=8.
    B, H, W, C = 2, 16, 16, 32
    class_num = 8
    x = jax.random.normal(kx, (B, H, W, C), dtype=jnp.float32)
    w = jax.random.normal(kw, (class_num, C), dtype=jnp.float32) * (1.0 / jnp.sqrt(C))

    out = jax.block_until_ready(classifier_head(x, w))
    ref = reference_head(x, w)
    assert out.shape == (B, class_num)
    assert jnp.allclose(out, ref, atol=1e-4, rtol=1e-4), "mismatch vs reference (case 1)"

    # Exercise the multi-chunk + ragged-HW mask path (7x7 spatial, tiny tile budget).
    x2 = jax.random.normal(kx2, (B, 7, 7, C), dtype=jnp.float32)
    out2 = jax.block_until_ready(classifier_head(x2, w, max_x_tile_bytes=16 * 1024))
    ref2 = reference_head(x2, w)
    assert out2.shape == (B, class_num)
    assert jnp.allclose(out2, ref2, atol=1e-4, rtol=1e-4), "mismatch vs reference (case 2)"

    print("KERNEL_OK")
</pallas_src>

<mosaic_0001>
module attributes {stable_mosaic.version = 11 : i64} {
  func.func @head_kernel(%arg0: i32, %arg1: i32, %arg2: memref<2x256x128xf32, #tpu.memory_space<vmem>>, %arg3: memref<128x128xf32, #tpu.memory_space<vmem>>, %arg4: memref<2x128xf32, #tpu.memory_space<vmem>>, %arg5: memref<2x8x128xf32, #tpu.memory_space<vmem>>) attributes {dimension_semantics = [#tpu.dimension_semantics<parallel>, #tpu.dimension_semantics<arbitrary>], iteration_bounds = array<i64: 1, 1>, scalar_prefetch = 0 : i64, scratch_operands = 1 : i64, tpu.core_type = #tpu.core_type<tc>, window_params = [{transform_indices = @transform_0, window_bounds = array<i64: 2, 256, 128>}, {pipeline_mode = #tpu.pipeline_mode<synchronous>, transform_indices = @transform_1, window_bounds = array<i64: 128, 128>}, {transform_indices = @transform_2, window_bounds = array<i64: 2, 128>}]} {
    %c0_i32 = arith.constant 0 : i32
    %0 = arith.cmpi eq, %arg1, %c0_i32 : i32
    %1 = arith.extui %0 : i1 to i32
    %c0_i32_0 = arith.constant 0 : i32
    %2 = arith.cmpi ne, %1, %c0_i32_0 : i32
    scf.if %2 {
      %cst_11 = arith.constant 0.000000e+00 : f32
      %12 = vector.broadcast %cst_11 : f32 to vector<2x8x128xf32>
      %c0_12 = arith.constant 0 : index
      %c0_13 = arith.constant 0 : index
      %c0_14 = arith.constant 0 : index
      %13 = vector.load %arg5[%c0_12, %c0_13, %c0_14] : memref<2x8x128xf32, #tpu.memory_space<vmem>>, vector<2x8x128xf32>
      tpu.vector_store %arg5[%c0_12, %c0_13, %c0_14], %12 {strides = array<i32>} : memref<2x8x128xf32, #tpu.memory_space<vmem>>, vector<2x8x128xf32>,
    } else {
    }
    %c0 = arith.constant 0 : index
    %c0_1 = arith.constant 0 : index
    %c0_2 = arith.constant 0 : index
    %3 = vector.load %arg2[%c0, %c0_1, %c0_2] : memref<2x256x128xf32, #tpu.memory_space<vmem>>, vector<2x256x128xf32>
    %c0_3 = arith.constant 0 : index
    %c0_4 = arith.constant 0 : index
    %c0_5 = arith.constant 0 : index
    %4 = vector.load %arg5[%c0_3, %c0_4, %c0_5] : memref<2x8x128xf32, #tpu.memory_space<vmem>>, vector<2x8x128xf32>
    %5 = vector.shape_cast %3 : vector<2x256x128xf32> to vector<2x32x8x128xf32>
    %cst = arith.constant dense<0.000000e+00> : vector<2x8x128xf32>
    %6 = vector.multi_reduction <add>, %5, %cst [1] : vector<2x32x8x128xf32> to vector<2x8x128xf32>
    %7 = arith.addf %4, %6 : vector<2x8x128xf32>
    %c0_6 = arith.constant 0 : index
    %c0_7 = arith.constant 0 : index
    %c0_8 = arith.constant 0 : index
    %8 = vector.load %arg5[%c0_6, %c0_7, %c0_8] : memref<2x8x128xf32, #tpu.memory_space<vmem>>, vector<2x8x128xf32>
    tpu.vector_store %arg5[%c0_6, %c0_7, %c0_8], %7 {strides = array<i32>} : memref<2x8x128xf32, #tpu.memory_space<vmem>>, vector<2x8x128xf32>,
    %c0_i32_9 = arith.constant 0 : i32
    %9 = arith.cmpi eq, %arg1, %c0_i32_9 : i32
    %10 = arith.extui %9 : i1 to i32
    %c0_i32_10 = arith.constant 0 : i32
    %11 = arith.cmpi ne, %10, %c0_i32_10 : i32
    scf.if %11 {
      %c0_11 = arith.constant 0 : index
      %c0_12 = arith.constant 0 : index
      %c0_13 = arith.constant 0 : index
      %12 = vector.load %arg5[%c0_11, %c0_12, %c0_13] : memref<2x8x128xf32, #tpu.memory_space<vmem>>, vector<2x8x128xf32>
      %cst_14 = arith.constant dense<0.000000e+00> : vector<2x128xf32>
      %13 = vector.multi_reduction <add>, %12, %cst_14 [1] : vector<2x8x128xf32> to vector<2x128xf32>
      %c0_15 = arith.constant 0 : index
      %c0_16 = arith.constant 0 : index
      %14 = vector.load %arg3[%c0_15, %c0_16] : memref<128x128xf32, #tpu.memory_space<vmem>>, vector<128x128xf32>
      %cst_17 = arith.constant dense<0.000000e+00> : vector<2x128xf32>
      %15 = tpu.matmul %13, %14, %cst_17 {dimension_numbers = #tpu.dot_dimension_numbers<[1], [1], [0], [0], [0, 0, 1, 0], [], []>} : vector<2x128xf32>, vector<128x128xf32>, vector<2x128xf32> -> vector<2x128xf32>
      %cst_18 = arith.constant 3.906250e-03 : f32
      %16 = vector.broadcast %cst_18 : f32 to vector<2x128xf32>
      %17 = arith.mulf %15, %16 : vector<2x128xf32>
      %c0_19 = arith.constant 0 : index
      %c0_20 = arith.constant 0 : index
      %18 = vector.load %arg4[%c0_19, %c0_20] : memref<2x128xf32, #tpu.memory_space<vmem>>, vector<2x128xf32>
      tpu.vector_store %arg4[%c0_19, %c0_20], %17 {strides = array<i32>} : memref<2x128xf32, #tpu.memory_space<vmem>>, vector<2x128xf32>,
    } else {
    }
    return
  }
  func.func @transform_0(%arg0: i32, %arg1: i32) -> (i32, i32, i32) {
    %c0_i32 = arith.constant 0 : i32
    %c0_i32_0 = arith.constant 0 : i32
    return %arg0, %arg1, %c0_i32 : i32, i32, i32
  }
  func.func @transform_1(%arg0: i32, %arg1: i32) -> (i32, i32) {
    %c0_i32 = arith.constant 0 : i32
    %c0_i32_0 = arith.constant 0 : i32
    %c0_i32_1 = arith.constant 0 : i32
    return %c0_i32, %c0_i32_0 : i32, i32
  }
  func.func @transform_2(%arg0: i32, %arg1: i32) -> (i32, i32) {
    %c0_i32 = arith.constant 0 : i32
    %c0_i32_0 = arith.constant 0 : i32
    return %arg0, %c0_i32 : i32, i32
  }
}

module attributes {stable_mosaic.version = 11 : i64} {
  func.func @head_kernel(%arg0: i32, %arg1: i32, %arg2: memref<2x256x128xf32, #tpu.memory_space<vmem>>, %arg3: memref<128x128xf32, #tpu.memory_space<vmem>>, %arg4: memref<2x128xf32, #tpu.memory_space<vmem>>, %arg5: memref<2x8x128xf32, #tpu.memory_space<vmem>>) attributes {dimension_semantics = [#tpu.dimension_semantics<parallel>, #tpu.dimension_semantics<arbitrary>], iteration_bounds = array<i64: 1, 1>, scalar_prefetch = 0 : i64, scratch_operands = 1 : i64, tpu.core_type = #tpu.core_type<tc>, window_params = [{transform_indices = @transform_0, window_bounds = array<i64: 2, 256, 128>}, {pipeline_mode = #tpu.pipeline_mode<synchronous>, transform_indices = @transform_1, window_bounds = array<i64: 128, 128>}, {transform_indices = @transform_2, window_bounds = array<i64: 2, 128>}]} {
    %c0_i32 = arith.constant 0 : i32
    %0 = arith.cmpi eq, %arg1, %c0_i32 : i32
    %1 = arith.extui %0 : i1 to i32
    %c0_i32_0 = arith.constant 0 : i32
    %2 = arith.cmpi ne, %1, %c0_i32_0 : i32
    scf.if %2 {
      %cst_11 = arith.constant 0.000000e+00 : f32
      %12 = vector.broadcast %cst_11 : f32 to vector<2x8x128xf32>
      %c0_12 = arith.constant 0 : index
      %c0_13 = arith.constant 0 : index
      %c0_14 = arith.constant 0 : index
      %13 = vector.load %arg5[%c0_12, %c0_13, %c0_14] : memref<2x8x128xf32, #tpu.memory_space<vmem>>, vector<2x8x128xf32>
      tpu.vector_store %arg5[%c0_12, %c0_13, %c0_14], %12 {strides = array<i32>} : memref<2x8x128xf32, #tpu.memory_space<vmem>>, vector<2x8x128xf32>,
    } else {
    }
    %c0 = arith.constant 0 : index
    %c0_1 = arith.constant 0 : index
    %c0_2 = arith.constant 0 : index
    %3 = vector.load %arg2[%c0, %c0_1, %c0_2] : memref<2x256x128xf32, #tpu.memory_space<vmem>>, vector<2x256x128xf32>
    %c0_3 = arith.constant 0 : index
    %c0_4 = arith.constant 0 : index
    %c0_5 = arith.constant 0 : index
    %4 = vector.load %arg5[%c0_3, %c0_4, %c0_5] : memref<2x8x128xf32, #tpu.memory_space<vmem>>, vector<2x8x128xf32>
    %5 = vector.shape_cast %3 : vector<2x256x128xf32> to vector<2x32x8x128xf32>
    %cst = arith.constant dense<0.000000e+00> : vector<2x8x128xf32>
    %6 = vector.multi_reduction <add>, %5, %cst [1] : vector<2x32x8x128xf32> to vector<2x8x128xf32>
    %7 = arith.addf %4, %6 : vector<2x8x128xf32>
    %c0_6 = arith.constant 0 : index
    %c0_7 = arith.constant 0 : index
    %c0_8 = arith.constant 0 : index
    %8 = vector.load %arg5[%c0_6, %c0_7, %c0_8] : memref<2x8x128xf32, #tpu.memory_space<vmem>>, vector<2x8x128xf32>
    tpu.vector_store %arg5[%c0_6, %c0_7, %c0_8], %7 {strides = array<i32>} : memref<2x8x128xf32, #tpu.memory_space<vmem>>, vector<2x8x128xf32>,
    %c0_i32_9 = arith.constant 0 : i32
    %9 = arith.cmpi eq, %arg1, %c0_i32_9 : i32
    %10 = arith.extui %9 : i1 to i32
    %c0_i32_10 = arith.constant 0 : i32
    %11 = arith.cmpi ne, %10, %c0_i32_10 : i32
    scf.if %11 {
      %c0_11 = arith.constant 0 : index
      %c0_12 = arith.constant 0 : index
      %c0_13 = arith.constant 0 : index
      %12 = vector.load %arg5[%c0_11, %c0_12, %c0_13] : memref<2x8x128xf32, #tpu.memory_space<vmem>>, vector<2x8x128xf32>
      %cst_14 = arith.constant dense<0.000000e+00> : vector<2x128xf32>
      %13 = vector.multi_reduction <add>, %12, %cst_14 [1] : vector<2x8x128xf32> to vector<2x128xf32>
      %c0_15 = arith.constant 0 : index
      %c0_16 = arith.constant 0 : index
      %14 = vector.load %arg3[%c0_15, %c0_16] : memref<128x128xf32, #tpu.memory_space<vmem>>, vector<128x128xf32>
      %cst_17 = arith.constant dense<0.000000e+00> : vector<2x128xf32>
      %15 = tpu.matmul %13, %14, %cst_17 {dimension_numbers = #tpu.dot_dimension_numbers<[1], [1], [0], [0], [0, 0, 1, 0], [], []>} : vector<2x128xf32>, vector<128x128xf32>, vector<2x128xf32> -> vector<2x128xf32>
      %cst_18 = arith.constant 3.906250e-03 : f32
      %16 = vector.broadcast %cst_18 : f32 to vector<2x128xf32>
      %17 = arith.mulf %15, %16 : vector<2x128xf32>
      %c0_19 = arith.constant 0 : index
      %c0_20 = arith.constant 0 : index
      %18 = vector.load %arg4[%c0_19, %c0_20] : memref<2x128xf32, #tpu.memory_space<vmem>>, vector<2x128xf32>
      tpu.vector_store %arg4[%c0_19, %c0_20], %17 {strides = array<i32>} : memref<2x128xf32, #tpu.memory_space<vmem>>, vector<2x128xf32>,
    } else {
    }
    return
  }
  func.func @transform_0(%arg0: i32, %arg1: i32) -> (i32, i32, i32) {
    %c0_i32 = arith.constant 0 : i32
    %c0_i32_0 = arith.constant 0 : i32
    return %arg0, %arg1, %c0_i32 : i32, i32, i32
  }
  func.func @transform_1(%arg0: i32, %arg1: i32) -> (i32, i32) {
    %c0_i32 = arith.constant 0 : i32
    %c0_i32_0 = arith.constant 0 : i32
    %c0_i32_1 = arith.constant 0 : i32
    return %c0_i32, %c0_i32_0 : i32, i32
  }
  func.func @transform_2(%arg0: i32, %arg1: i32) -> (i32, i32) {
    %c0_i32 = arith.constant 0 : i32
    %c0_i32_0 = arith.constant 0 : i32
    return %arg0, %c0_i32 : i32, i32
  }
}

</mosaic_0001>

<llo_original>
// kernel: tpu_custom_call.1
$region0: #{tpu_custom_call.1}
  #allocation0 [shape = 'u32[]', space=smem, size = 0x4, offset = 0x4, fixed_abs, tag = 'smem constant byte address 0x4 - core index']
  #allocation1 [shape = 'u32[144,128]{1,0:T(1,128)}', space=vmem, size = 0x12000, scoped, tag = 'internal scratch']
  #allocation2 [shape = 'f32[2,8,128]{2,1,0:T(8,128)}', space=vmem, size = 0x2000, scoped, tag = 'scratch operand']
  %s0 = inlined_call_operand.hbm [shape: f32[2,256,128], index: 0, kind: input, shape index: {}]
  %s1 = inlined_call_operand.hbm [shape: f32[128,128], index: 1, kind: input, shape index: {}]
  %s2 = inlined_call_operand.hbm [shape: f32[2,128], index: 2, kind: output, shape index: {}]
  %s3 = sld [smem:[#allocation0]]
  $region34: #{tpu_custom_call.1} parent=0
    _
  %s5 = ssub.s32 1, %s3
  %s6 = scalar_select 0, %s5, %s3
  $region1: #{tpu_custom_call.1} parent=0
    #allocation3 [shape = 'u8[262144]{0}', space=vmem, size = 0x40000, scoped, tag = 'input window, operand 0, single buffered']
    #allocation4 [shape = 's32[1]{0}', space=sflag, size = 0x4, scoped, tag = 'scoped memory for tpu_custom_call.1']
    #allocation5 [shape = 's32[1]{0}', space=sflag, size = 0x4, scoped, tag = 'scoped memory for tpu_custom_call.1']
    #allocation6 [shape = 'u8[65536]{0}', space=vmem, size = 0x10000, scoped, tag = 'input window, operand 1, single buffered']
    #allocation7 [shape = 's32[1]{0}', space=sflag, size = 0x4, scoped, tag = 'scoped memory for tpu_custom_call.1']
    #allocation8 [shape = 'u8[1024]{0}', space=vmem, size = 0x400, scoped, tag = 'output window, operand 0, single buffered']
    %7 = vsyncpa [#allocation4], 0
    %8 = vsyncpa [#allocation7], 0
    %9 = vsyncpa [#allocation5], 0
    // Predicated region
    $region2: #{tpu_custom_call.1} parent=1 // pred_check
      _
    $region3: #{tpu_custom_call.1} parent=1 // pred_check_branch
      %11 = sbr.rel (0) target = $region5
    $region4: #{tpu_custom_call.1} parent=1 // pred_region
      %s13 = ssub.s32 8192, 8192
      %14 = vsyncadd [#allocation4], %s13
      %s15 = sshll.u32 [#allocation3], 4
      %s16 = int_to_ptr.vmem [resolvable:$true] %s15
      %21 = dma.hbm_to_vmem [thread:$0]  %s0, 8192, %s16, [#allocation4], 128, 128, 8
    $region5: #{tpu_custom_call.1} parent=1 // pred_fallthru
      _
    // Predicated region
    $region6: #{tpu_custom_call.1} parent=1 // pred_check
      _
    $region7: #{tpu_custom_call.1} parent=1 // pred_check_branch
      %23 = sbr.rel (0) target = $region9
    $region8: #{tpu_custom_call.1} parent=1 // pred_region
      %s25 = ssub.s32 2048, 2048
      %26 = vsyncadd [#allocation7], %s25
      %s27 = sshll.u32 [#allocation6], 4
      %s28 = int_to_ptr.vmem [resolvable:$true] %s27
      %33 = dma.hbm_to_vmem [thread:$0]  %s1, 2048, %s28, [#allocation7], 128, 128, 8
    $region9: #{tpu_custom_call.1} parent=1 // pred_fallthru
      _
    // Predicated region
    $region10: #{tpu_custom_call.1} parent=1 // pred_check
      _
    $region11: #{tpu_custom_call.1} parent=1 // pred_check_branch
      %35 = sbr.rel (0) target = $region13
    $region12: #{tpu_custom_call.1} parent=1 // pred_region
      %36 = dma.done [#allocation4], 8192
    $region13: #{tpu_custom_call.1} parent=1 // pred_fallthru
      _
    // Predicated region
    $region14: #{tpu_custom_call.1} parent=1 // pred_check
      _
    $region15: #{tpu_custom_call.1} parent=1 // pred_check_branch
      %38 = sbr.rel (0) target = $region17
    $region16: #{tpu_custom_call.1} parent=1 // pred_region
      %39 = dma.done [#allocation7], 2048
    $region17: #{tpu_custom_call.1} parent=1 // pred_fallthru
      _
    %p40 = scmp.eq.s32.totalorder 0, 0
    // Predicated region
    $region18: #{tpu_custom_call.1} parent=1 // pred_check
      %p41 = pneg %p40
    $region19: #{tpu_custom_call.1} parent=1 // pred_check_branch
      %43 = sbr.rel (%p41) target = $region21
    $region20: #{tpu_custom_call.1} parent=1 // pred_region
      %44 = vst [vmem:[#allocation2] sm:$0xff] 0.0
      %45 = vst [vmem:[#allocation2 + $0x8] sm:$0xff] 0.0
    $region21: #{tpu_custom_call.1} parent=1 // pred_fallthru
      _
    %v46 = vld [vmem:[#allocation3] sm:$0xff]
    %v47 = vld [vmem:[#allocation3 + $0x8] sm:$0xff]
    %v48 = vld [vmem:[#allocation3 + $0x10] sm:$0xff]
    %v49 = vld [vmem:[#allocation3 + $0x18] sm:$0xff]
    %v50 = vld [vmem:[#allocation3 + $0x20] sm:$0xff]
    %v51 = vld [vmem:[#allocation3 + $0x28] sm:$0xff]
    %v52 = vld [vmem:[#allocation3 + $0x30] sm:$0xff]
    %v53 = vld [vmem:[#allocation3 + $0x38] sm:$0xff]
    %v54 = vld [vmem:[#allocation3 + $0x40] sm:$0xff]
    %v55 = vld [vmem:[#allocation3 + $0x48] sm:$0xff]
    %v56 = vld [vmem:[#allocation3 + $0x50] sm:$0xff]
    %v57 = vld [vmem:[#allocation3 + $0x58] sm:$0xff]
    %v58 = vld [vmem:[#allocation3 + $0x60] sm:$0xff]
    %v59 = vld [vmem:[#allocation3 + $0x68] sm:$0xff]
    %v60 = vld [vmem:[#allocation3 + $0x70] sm:$0xff]
    %v61 = vld [vmem:[#allocation3 + $0x78] sm:$0xff]
    %v62 = vld [vmem:[#allocation3 + $0x80] sm:$0xff]
    %v63 = vld [vmem:[#allocation3 + $0x88] sm:$0xff]
    %v64 = vld [vmem:[#allocation3 + $0x90] sm:$0xff]
    %v65 = vld [vmem:[#allocation3 + $0x98] sm:$0xff]
    %v66 = vld [vmem:[#allocation3 + $0xa0] sm:$0xff]
    %v67 = vld [vmem:[#allocation3 + $0xa8] sm:$0xff]
    %v68 = vld [vmem:[#allocation3 + $0xb0] sm:$0xff]
    %v69 = vld [vmem:[#allocation3 + $0xb8] sm:$0xff]
    %v70 = vld [vmem:[#allocation3 + $0xc0] sm:$0xff]
    %v71 = vld [vmem:[#allocation3 + $0xc8] sm:$0xff]
    %v72 = vld [vmem:[#allocation3 + $0xd0] sm:$0xff]
    %v73 = vld [vmem:[#allocation3 + $0xd8] sm:$0xff]
    %v74 = vld [vmem:[#allocation3 + $0xe0] sm:$0xff]
    %v75 = vld [vmem:[#allocation3 + $0xe8] sm:$0xff]
    %v76 = vld [vmem:[#allocation3 + $0xf0] sm:$0xff]
    %v77 = vld [vmem:[#allocation3 + $0xf8] sm:$0xff]
    %v78 = vld [vmem:[#allocation3 + $0x100] sm:$0xff]
    %v79 = vld [vmem:[#allocation3 + $0x108] sm:$0xff]
    %v80 = vld [vmem:[#allocation3 + $0x110] sm:$0xff]
    %v81 = vld [vmem:[#allocation3 + $0x118] sm:$0xff]
    %v82 = vld [vmem:[#allocation3 + $0x120] sm:$0xff]
    %v83 = vld [vmem:[#allocation3 + $0x128] sm:$0xff]
    %v84 = vld [vmem:[#allocation3 + $0x130] sm:$0xff]
    %v85 = vld [vmem:[#allocation3 + $0x138] sm:$0xff]
    %v86 = vld [vmem:[#allocation3 + $0x140] sm:$0xff]
    %v87 = vld [vmem:[#allocation3 + $0x148] sm:$0xff]
    %v88 = vld [vmem:[#allocation3 + $0x150] sm:$0xff]
    %v89 = vld [vmem:[#allocation3 + $0x158] sm:$0xff]
    %v90 = vld [vmem:[#allocation3 + $0x160] sm:$0xff]
    %v91 = vld [vmem:[#allocation3 + $0x168] sm:$0xff]
    %v92 = vld [vmem:[#allocation3 + $0x170] sm:$0xff]
    %v93 = vld [vmem:[#allocation3 + $0x178] sm:$0xff]
    %v94 = vld [vmem:[#allocation3 + $0x180] sm:$0xff]
    %v95 = vld [vmem:[#allocation3 + $0x188] sm:$0xff]
    %v96 = vld [vmem:[#allocation3 + $0x190] sm:$0xff]
    %v97 = vld [vmem:[#allocation3 + $0x198] sm:$0xff]
    %v98 = vld [vmem:[#allocation3 + $0x1a0] sm:$0xff]
    %v99 = vld [vmem:[#allocation3 + $0x1a8] sm:$0xff]
    %v100 = vld [vmem:[#allocation3 + $0x1b0] sm:$0xff]
    %v101 = vld [vmem:[#allocation3 + $0x1b8] sm:$0xff]
    %v102 = vld [vmem:[#allocation3 + $0x1c0] sm:$0xff]
    %v103 = vld [vmem:[#allocation3 + $0x1c8] sm:$0xff]
    %v104 = vld [vmem:[#allocation3 + $0x1d0] sm:$0xff]
    %v105 = vld [vmem:[#allocation3 + $0x1d8] sm:$0xff]
    %v106 = vld [vmem:[#allocation3 + $0x1e0] sm:$0xff]
    %v107 = vld [vmem:[#allocation3 + $0x1e8] sm:$0xff]
    %v108 = vld [vmem:[#allocation3 + $0x1f0] sm:$0xff]
    %v109 = vld [vmem:[#allocation3 + $0x1f8] sm:$0xff]
    %v110 = vld [vmem:[#allocation2] sm:$0xff]
    %v111 = vld [vmem:[#allocation2 + $0x8] sm:$0xff]
    %v112 = vadd.f32 %v46, %v47
    %v113 = vadd.f32 %v112, %v48
    %v114 = vadd.f32 %v113, %v49
    %v115 = vadd.f32 %v114, %v50
    %v116 = vadd.f32 %v115, %v51
    %v117 = vadd.f32 %v116, %v52
    %v118 = vadd.f32 %v117, %v53
    %v119 = vadd.f32 %v118, %v54
    %v120 = vadd.f32 %v119, %v55
    %v121 = vadd.f32 %v120, %v56
    %v122 = vadd.f32 %v121, %v57
    %v123 = vadd.f32 %v122, %v58
    %v124 = vadd.f32 %v123, %v59
    %v125 = vadd.f32 %v124, %v60
    %v126 = vadd.f32 %v125, %v61
    %v127 = vadd.f32 %v126, %v62
    %v128 = vadd.f32 %v127, %v63
    %v129 = vadd.f32 %v128, %v64
    %v130 = vadd.f32 %v129, %v65
    %v131 = vadd.f32 %v130, %v66
    %v132 = vadd.f32 %v131, %v67
    %v133 = vadd.f32 %v132, %v68
    %v134 = vadd.f32 %v133, %v69
    %v135 = vadd.f32 %v134, %v70
    %v136 = vadd.f32 %v135, %v71
    %v137 = vadd.f32 %v136, %v72
    %v138 = vadd.f32 %v137, %v73
    %v139 = vadd.f32 %v138, %v74
    %v140 = vadd.f32 %v139, %v75
    %v141 = vadd.f32 %v140, %v76
    %v142 = vadd.f32 %v141, %v77
    %v143 = vadd.f32 %v78, %v79
    %v144 = vadd.f32 %v143, %v80
    %v145 = vadd.f32 %v144, %v81
    %v146 = vadd.f32 %v145, %v82
    %v147 = vadd.f32 %v146, %v83
    %v148 = vadd.f32 %v147, %v84
    %v149 = vadd.f32 %v148, %v85
    %v150 = vadd.f32 %v149, %v86
    %v151 = vadd.f32 %v150, %v87
    %v152 = vadd.f32 %v151, %v88
    %v153 = vadd.f32 %v152, %v89
    %v154 = vadd.f32 %v153, %v90
    %v155 = vadd.f32 %v154, %v91
    %v156 = vadd.f32 %v155, %v92
    %v157 = vadd.f32 %v156, %v93
    %v158 = vadd.f32 %v157, %v94
    %v159 = vadd.f32 %v158, %v95
    %v160 = vadd.f32 %v159, %v96
    %v161 = vadd.f32 %v160, %v97
    %v162 = vadd.f32 %v161, %v98
    %v163 = vadd.f32 %v162, %v99
    %v164 = vadd.f32 %v163, %v100
    %v165 = vadd.f32 %v164, %v101
    %v166 = vadd.f32 %v165, %v102
    %v167 = vadd.f32 %v166, %v103
    %v168 = vadd.f32 %v167, %v104
    %v169 = vadd.f32 %v168, %v105
    %v170 = vadd.f32 %v169, %v106
    %v171 = vadd.f32 %v170, %v107
    %v172 = vadd.f32 %v171, %v108
    %v173 = vadd.f32 %v172, %v109
    %v174 = vadd.f32 %v110, %v142
    %v175 = vadd.f32 %v111, %v173
    %176 = vst [vmem:[#allocation2] sm:$0xff] %v174
    %177 = vst [vmem:[#allocation2 + $0x8] sm:$0xff] %v175
    // Predicated region
    $region22: #{tpu_custom_call.1} parent=1 // pred_check
      %p178 = pneg %p40
    $region23: #{tpu_custom_call.1} parent=1 // pred_check_branch
      %180 = sbr.rel (%p178) target = $region25
    $region24: #{tpu_custom_call.1} parent=1 // pred_region
      %v181 = vld [vmem:[#allocation2] sm:$0xff]
      %v182 = vld [vmem:[#allocation2 + $0x8] sm:$0xff]
      %v183 = vrot.slane %v181, 4
      %v184 = vadd.f32 %v181, %v183
      %v185 = vrot.slane %v184, 2
      %v186 = vadd.f32 %v184, %v185
      %v187 = vrot.slane %v186, 1
      %v188 = vadd.f32 %v186, %v187
      %v189 = vrot.slane %v182, 4
      %v190 = vadd.f32 %v182, %v189
      %v191 = vrot.slane %v190, 2
      %v192 = vadd.f32 %v190, %v191
      %v193 = vrot.slane %v192, 1
      %v194 = vadd.f32 %v192, %v193
      %v195 = vld [vmem:[#allocation6] sm:$0xff]
      %v196 = vld [vmem:[#allocation6 + $0x8] sm:$0xff]
      %v197 = vld [vmem:[#allocation6 + $0x10] sm:$0xff]
      %v198 = vld [vmem:[#allocation6 + $0x18] sm:$0xff]
      %v199 = vld [vmem:[#allocation6 + $0x20] sm:$0xff]
      %v200 = vld [vmem:[#allocation6 + $0x28] sm:$0xff]
      %v201 = vld [vmem:[#allocation6 + $0x30] sm:$0xff]
      %v202 = vld [vmem:[#allocation6 + $0x38] sm:$0xff]
      %v203 = vld [vmem:[#allocation6 + $0x40] sm:$0xff]
      %v204 = vld [vmem:[#allocation6 + $0x48] sm:$0xff]
      %v205 = vld [vmem:[#allocation6 + $0x50] sm:$0xff]
      %v206 = vld [vmem:[#allocation6 + $0x58] sm:$0xff]
      %v207 = vld [vmem:[#allocation6 + $0x60] sm:$0xff]
      %v208 = vld [vmem:[#allocation6 + $0x68] sm:$0xff]
      %v209 = vld [vmem:[#allocation6 + $0x70] sm:$0xff]
      %v210 = vld [vmem:[#allocation6 + $0x78] sm:$0xff]
      %vm213 = vcmask 1041409
      %v214 = vsel %vm213, %v194, %v188
      %216 = vmatprep.subr.mxu0 0.0
      %217 = vmatpush1.xpose.msra.mxu0 %v195
      %218 = vmatprep.subr.mxu0 0.0
      %219 = vmatpush1.xpose.msra.mxu0 %v196
      %220 = vmatprep.subr.mxu0 0.0
      %221 = vmatpush1.xpose.msra.mxu0 %v197
      %222 = vmatprep.subr.mxu0 0.0
      %223 = vmatpush1.xpose.msra.mxu0 %v198
      %224 = vmatprep.subr.mxu0 0.0
      %225 = vmatpush1.xpose.msra.mxu0 %v199
      %226 = vmatprep.subr.mxu0 0.0
      %227 = vmatpush1.xpose.msra.mxu0 %v200
      %228 = vmatprep.subr.mxu0 0.0
      %229 = vmatpush1.xpose.msra.mxu0 %v201
      %230 = vmatprep.subr.mxu0 0.0
      %231 = vmatpush1.xpose.msra.mxu0 %v202
      %232 = vmatprep.subr.mxu0 0.0
      %233 = vmatpush1.xpose.msra.mxu0 %v203
      %234 = vmatprep.subr.mxu0 0.0
      %235 = vmatpush1.xpose.msra.mxu0 %v204
      %236 = vmatprep.subr.mxu0 0.0
      %237 = vmatpush1.xpose.msra.mxu0 %v205
      %238 = vmatprep.subr.mxu0 0.0
      %239 = vmatpush1.xpose.msra.mxu0 %v206
      %240 = vmatprep.subr.mxu0 0.0
      %241 = vmatpush1.xpose.msra.mxu0 %v207
      %242 = vmatprep.subr.mxu0 0.0
      %243 = vmatpush1.xpose.msra.mxu0 %v208
      %244 = vmatprep.subr.mxu0 0.0
      %245 = vmatpush1.xpose.msra.mxu0 %v209
      %246 = vmatprep.subr.mxu0 0.0
      %247 = vmatpush1.xpose.msra.mxu0 %v210
      %248 = vmatprep.subr.mxu0 0.0
      %249 = vmatpush1.xpose.msra.mxu0 0.0
      %250 = vmatprep.subr.mxu0 0.0
      %251 = vmatpush1.xpose.msra.mxu0 0.0
      %252 = vmatprep.subr.mxu0 0.0
      %253 = vmatpush1.xpose.msra.mxu0 0.0
      %254 = vmatprep.subr.mxu0 0.0
      %255 = vmatpush1.xpose.msra.mxu0 0.0
      %256 = vmatprep.subr.mxu0 0.0
      %257 = vmatpush1.xpose.msra.mxu0 0.0
      %258 = vmatprep.subr.mxu0 0.0
      %259 = vmatpush1.xpose.msra.mxu0 0.0
      %260 = vmatprep.subr.mxu0 0.0
      %261 = vmatpush1.xpose.msra.mxu0 0.0
      %262 = vmatprep.subr.mxu0 0.0
      %263 = vmatpush1.xpose.msra.mxu0 0.0
      %264 = vmatprep.subr.mxu0 0.0
      %265 = vmatpush1.xpose.msra.mxu0 0.0
      %266 = vmatprep.subr.mxu0 0.0
      %267 = vmatpush1.xpose.msra.mxu0 0.0
      %268 = vmatprep.subr.mxu0 0.0
      %269 = vmatpush1.xpose.msra.mxu0 0.0
      %270 = vmatprep.subr.mxu0 0.0
      %271 = vmatpush1.xpose.msra.mxu0 0.0
      %272 = vmatprep.subr.mxu0 0.0
      %273 = vmatpush1.xpose.msra.mxu0 0.0
      %274 = vmatprep.subr.mxu0 0.0
      %275 = vmatpush1.xpose.msra.mxu0 0.0
      %276 = vmatprep.subr.mxu0 0.0
      %277 = vmatpush1.xpose.msra.mxu0 0.0
      %278 = vmatprep.subr.mxu0 0.0
      %279 = vmatpush1.xpose.msra.mxu0 0.0
      %280 = vmatprep.mubr.f32.mxu0 0.0
      %281 = vmatmul.mubr.f32.gmra.mrb[0].mxu0 %v214
      %v282 = vpop.f32.mrb[0].mxu0
      %v283 = vadd.f32 0.0, %v282
      %v284 = vpop.f32.mrb[0].mxu0
      %285 = vdwg.mxu0
      %v286 = vmul.f32 %v283, 0.00390625
      %287 = vst [vmem:[#allocation8] sm:$0x3] %v286
    $region25: #{tpu_custom_call.1} parent=1 // pred_fallthru
      _
    // Predicated region
    $region26: #{tpu_custom_call.1} parent=1 // pred_check
      _
    $region27: #{tpu_custom_call.1} parent=1 // pred_check_branch
      %289 = sbr.rel (0) target = $region29
    $region28: #{tpu_custom_call.1} parent=1 // pred_region
      %s291 = ssub.s32 32, 32
      %292 = vsyncadd [#allocation5], %s291
      %s294 = sshll.u32 [#allocation8], 4
      %s295 = int_to_ptr.vmem [resolvable:$true] %s294
      %297 = dma.vmem_to_hbm [thread:$0]  %s295, 32, %s2, [#allocation5]
    $region29: #{tpu_custom_call.1} parent=1 // pred_fallthru
      _
    // Predicated region
    $region30: #{tpu_custom_call.1} parent=1 // pred_check
      _
    $region31: #{tpu_custom_call.1} parent=1 // pred_check_branch
      %299 = sbr.rel (0) target = $region33
    $region32: #{tpu_custom_call.1} parent=1 // pred_region
      %300 = dma.done [#allocation5], 32
    $region33: #{tpu_custom_call.1} parent=1 // pred_fallthru
      _
    %301 = vsyncpa [#allocation4], 1
    %302 = vsyncpa [#allocation7], 1
    %303 = vsyncpa [#allocation5], 1

// kernel: tpu_custom_call.1
$region0: #{tpu_custom_call.1}
  #allocation0 [shape = 'u32[]', space=smem, size = 0x4, offset = 0x4, fixed_abs, tag = 'smem constant byte address 0x4 - core index']
  #allocation1 [shape = 'u32[144,128]{1,0:T(1,128)}', space=vmem, size = 0x12000, scoped, tag = 'internal scratch']
  #allocation2 [shape = 'f32[2,8,128]{2,1,0:T(8,128)}', space=vmem, size = 0x2000, scoped, tag = 'scratch operand']
  %s0 = inlined_call_operand.hbm [shape: f32[2,256,128], index: 0, kind: input, shape index: {}]
  %s1 = inlined_call_operand.hbm [shape: f32[128,128], index: 1, kind: input, shape index: {}]
  %s2 = inlined_call_operand.hbm [shape: f32[2,128], index: 2, kind: output, shape index: {}]
  %s3 = sld [smem:[#allocation0]]
  $region34: #{tpu_custom_call.1} parent=0
    _
  %s5 = ssub.s32 1, %s3
  %s6 = scalar_select 0, %s5, %s3
  $region1: #{tpu_custom_call.1} parent=0
    #allocation3 [shape = 'u8[262144]{0}', space=vmem, size = 0x40000, scoped, tag = 'input window, operand 0, single buffered']
    #allocation4 [shape = 's32[1]{0}', space=sflag, size = 0x4, scoped, tag = 'scoped memory for tpu_custom_call.1']
    #allocation5 [shape = 's32[1]{0}', space=sflag, size = 0x4, scoped, tag = 'scoped memory for tpu_custom_call.1']
    #allocation6 [shape = 'u8[65536]{0}', space=vmem, size = 0x10000, scoped, tag = 'input window, operand 1, single buffered']
    #allocation7 [shape = 's32[1]{0}', space=sflag, size = 0x4, scoped, tag = 'scoped memory for tpu_custom_call.1']
    #allocation8 [shape = 'u8[1024]{0}', space=vmem, size = 0x400, scoped, tag = 'output window, operand 0, single buffered']
    %7 = vsyncpa [#allocation4], 0
    %8 = vsyncpa [#allocation7], 0
    %9 = vsyncpa [#allocation5], 0
    // Predicated region
    $region2: #{tpu_custom_call.1} parent=1 // pred_check
      _
    $region3: #{tpu_custom_call.1} parent=1 // pred_check_branch
      %11 = sbr.rel (0) target = $region5
    $region4: #{tpu_custom_call.1} parent=1 // pred_region
      %s13 = ssub.s32 8192, 8192
      %14 = vsyncadd [#allocation4], %s13
      %s15 = sshll.u32 [#allocation3], 4
      %s16 = int_to_ptr.vmem [resolvable:$true] %s15
      %21 = dma.hbm_to_vmem [thread:$0]  %s0, 8192, %s16, [#allocation4], 128, 128, 8
    $region5: #{tpu_custom_call.1} parent=1 // pred_fallthru
      _
    // Predicated region
    $region6: #{tpu_custom_call.1} parent=1 // pred_check
      _
    $region7: #{tpu_custom_call.1} parent=1 // pred_check_branch
      %23 = sbr.rel (0) target = $region9
    $region8: #{tpu_custom_call.1} parent=1 // pred_region
      %s25 = ssub.s32 2048, 2048
      %26 = vsyncadd [#allocation7], %s25
      %s27 = sshll.u32 [#allocation6], 4
      %s28 = int_to_ptr.vmem [resolvable:$true] %s27
      %33 = dma.hbm_to_vmem [thread:$0]  %s1, 2048, %s28, [#allocation7], 128, 128, 8
    $region9: #{tpu_custom_call.1} parent=1 // pred_fallthru
      _
    // Predicated region
    $region10: #{tpu_custom_call.1} parent=1 // pred_check
      _
    $region11: #{tpu_custom_call.1} parent=1 // pred_check_branch
      %35 = sbr.rel (0) target = $region13
    $region12: #{tpu_custom_call.1} parent=1 // pred_region
      %36 = dma.done [#allocation4], 8192
    $region13: #{tpu_custom_call.1} parent=1 // pred_fallthru
      _
    // Predicated region
    $region14: #{tpu_custom_call.1} parent=1 // pred_check
      _
    $region15: #{tpu_custom_call.1} parent=1 // pred_check_branch
      %38 = sbr.rel (0) target = $region17
    $region16: #{tpu_custom_call.1} parent=1 // pred_region
      %39 = dma.done [#allocation7], 2048
    $region17: #{tpu_custom_call.1} parent=1 // pred_fallthru
      _
    %p40 = scmp.eq.s32.totalorder 0, 0
    // Predicated region
    $region18: #{tpu_custom_call.1} parent=1 // pred_check
      %p41 = pneg %p40
    $region19: #{tpu_custom_call.1} parent=1 // pred_check_branch
      %43 = sbr.rel (%p41) target = $region21
    $region20: #{tpu_custom_call.1} parent=1 // pred_region
      %44 = vst [vmem:[#allocation2] sm:$0xff] 0.0
      %45 = vst [vmem:[#allocation2 + $0x8] sm:$0xff] 0.0
    $region21: #{tpu_custom_call.1} parent=1 // pred_fallthru
      _
    %v46 = vld [vmem:[#allocation3] sm:$0xff]
    %v47 = vld [vmem:[#allocation3 + $0x8] sm:$0xff]
    %v48 = vld [vmem:[#allocation3 + $0x10] sm:$0xff]
    %v49 = vld [vmem:[#allocation3 + $0x18] sm:$0xff]
    %v50 = vld [vmem:[#allocation3 + $0x20] sm:$0xff]
    %v51 = vld [vmem:[#allocation3 + $0x28] sm:$0xff]
    %v52 = vld [vmem:[#allocation3 + $0x30] sm:$0xff]
    %v53 = vld [vmem:[#allocation3 + $0x38] sm:$0xff]
    %v54 = vld [vmem:[#allocation3 + $0x40] sm:$0xff]
    %v55 = vld [vmem:[#allocation3 + $0x48] sm:$0xff]
    %v56 = vld [vmem:[#allocation3 + $0x50] sm:$0xff]
    %v57 = vld [vmem:[#allocation3 + $0x58] sm:$0xff]
    %v58 = vld [vmem:[#allocation3 + $0x60] sm:$0xff]
    %v59 = vld [vmem:[#allocation3 + $0x68] sm:$0xff]
    %v60 = vld [vmem:[#allocation3 + $0x70] sm:$0xff]
    %v61 = vld [vmem:[#allocation3 + $0x78] sm:$0xff]
    %v62 = vld [vmem:[#allocation3 + $0x80] sm:$0xff]
    %v63 = vld [vmem:[#allocation3 + $0x88] sm:$0xff]
    %v64 = vld [vmem:[#allocation3 + $0x90] sm:$0xff]
    %v65 = vld [vmem:[#allocation3 + $0x98] sm:$0xff]
    %v66 = vld [vmem:[#allocation3 + $0xa0] sm:$0xff]
    %v67 = vld [vmem:[#allocation3 + $0xa8] sm:$0xff]
    %v68 = vld [vmem:[#allocation3 + $0xb0] sm:$0xff]
    %v69 = vld [vmem:[#allocation3 + $0xb8] sm:$0xff]
    %v70 = vld [vmem:[#allocation3 + $0xc0] sm:$0xff]
    %v71 = vld [vmem:[#allocation3 + $0xc8] sm:$0xff]
    %v72 = vld [vmem:[#allocation3 + $0xd0] sm:$0xff]
    %v73 = vld [vmem:[#allocation3 + $0xd8] sm:$0xff]
    %v74 = vld [vmem:[#allocation3 + $0xe0] sm:$0xff]
    %v75 = vld [vmem:[#allocation3 + $0xe8] sm:$0xff]
    %v76 = vld [vmem:[#allocation3 + $0xf0] sm:$0xff]
    %v77 = vld [vmem:[#allocation3 + $0xf8] sm:$0xff]
    %v78 = vld [vmem:[#allocation3 + $0x100] sm:$0xff]
    %v79 = vld [vmem:[#allocation3 + $0x108] sm:$0xff]
    %v80 = vld [vmem:[#allocation3 + $0x110] sm:$0xff]
    %v81 = vld [vmem:[#allocation3 + $0x118] sm:$0xff]
    %v82 = vld [vmem:[#allocation3 + $0x120] sm:$0xff]
    %v83 = vld [vmem:[#allocation3 + $0x128] sm:$0xff]
    %v84 = vld [vmem:[#allocation3 + $0x130] sm:$0xff]
    %v85 = vld [vmem:[#allocation3 + $0x138] sm:$0xff]
    %v86 = vld [vmem:[#allocation3 + $0x140] sm:$0xff]
    %v87 = vld [vmem:[#allocation3 + $0x148] sm:$0xff]
    %v88 = vld [vmem:[#allocation3 + $0x150] sm:$0xff]
    %v89 = vld [vmem:[#allocation3 + $0x158] sm:$0xff]
    %v90 = vld [vmem:[#allocation3 + $0x160] sm:$0xff]
    %v91 = vld [vmem:[#allocation3 + $0x168] sm:$0xff]
    %v92 = vld [vmem:[#allocation3 + $0x170] sm:$0xff]
    %v93 = vld [vmem:[#allocation3 + $0x178] sm:$0xff]
    %v94 = vld [vmem:[#allocation3 + $0x180] sm:$0xff]
    %v95 = vld [vmem:[#allocation3 + $0x188] sm:$0xff]
    %v96 = vld [vmem:[#allocation3 + $0x190] sm:$0xff]
    %v97 = vld [vmem:[#allocation3 + $0x198] sm:$0xff]
    %v98 = vld [vmem:[#allocation3 + $0x1a0] sm:$0xff]
    %v99 = vld [vmem:[#allocation3 + $0x1a8] sm:$0xff]
    %v100 = vld [vmem:[#allocation3 + $0x1b0] sm:$0xff]
    %v101 = vld [vmem:[#allocation3 + $0x1b8] sm:$0xff]
    %v102 = vld [vmem:[#allocation3 + $0x1c0] sm:$0xff]
    %v103 = vld [vmem:[#allocation3 + $0x1c8] sm:$0xff]
    %v104 = vld [vmem:[#allocation3 + $0x1d0] sm:$0xff]
    %v105 = vld [vmem:[#allocation3 + $0x1d8] sm:$0xff]
    %v106 = vld [vmem:[#allocation3 + $0x1e0] sm:$0xff]
    %v107 = vld [vmem:[#allocation3 + $0x1e8] sm:$0xff]
    %v108 = vld [vmem:[#allocation3 + $0x1f0] sm:$0xff]
    %v109 = vld [vmem:[#allocation3 + $0x1f8] sm:$0xff]
    %v110 = vld [vmem:[#allocation2] sm:$0xff]
    %v111 = vld [vmem:[#allocation2 + $0x8] sm:$0xff]
    %v112 = vadd.f32 %v46, %v47
    %v113 = vadd.f32 %v112, %v48
    %v114 = vadd.f32 %v113, %v49
    %v115 = vadd.f32 %v114, %v50
    %v116 = vadd.f32 %v115, %v51
    %v117 = vadd.f32 %v116, %v52
    %v118 = vadd.f32 %v117, %v53
    %v119 = vadd.f32 %v118, %v54
    %v120 = vadd.f32 %v119, %v55
    %v121 = vadd.f32 %v120, %v56
    %v122 = vadd.f32 %v121, %v57
    %v123 = vadd.f32 %v122, %v58
    %v124 = vadd.f32 %v123, %v59
    %v125 = vadd.f32 %v124, %v60
    %v126 = vadd.f32 %v125, %v61
    %v127 = vadd.f32 %v126, %v62
    %v128 = vadd.f32 %v127, %v63
    %v129 = vadd.f32 %v128, %v64
    %v130 = vadd.f32 %v129, %v65
    %v131 = vadd.f32 %v130, %v66
    %v132 = vadd.f32 %v131, %v67
    %v133 = vadd.f32 %v132, %v68
    %v134 = vadd.f32 %v133, %v69
    %v135 = vadd.f32 %v134, %v70
    %v136 = vadd.f32 %v135, %v71
    %v137 = vadd.f32 %v136, %v72
    %v138 = vadd.f32 %v137, %v73
    %v139 = vadd.f32 %v138, %v74
    %v140 = vadd.f32 %v139, %v75
    %v141 = vadd.f32 %v140, %v76
    %v142 = vadd.f32 %v141, %v77
    %v143 = vadd.f32 %v78, %v79
    %v144 = vadd.f32 %v143, %v80
    %v145 = vadd.f32 %v144, %v81
    %v146 = vadd.f32 %v145, %v82
    %v147 = vadd.f32 %v146, %v83
    %v148 = vadd.f32 %v147, %v84
    %v149 = vadd.f32 %v148, %v85
    %v150 = vadd.f32 %v149, %v86
    %v151 = vadd.f32 %v150, %v87
    %v152 = vadd.f32 %v151, %v88
    %v153 = vadd.f32 %v152, %v89
    %v154 = vadd.f32 %v153, %v90
    %v155 = vadd.f32 %v154, %v91
    %v156 = vadd.f32 %v155, %v92
    %v157 = vadd.f32 %v156, %v93
    %v158 = vadd.f32 %v157, %v94
    %v159 = vadd.f32 %v158, %v95
    %v160 = vadd.f32 %v159, %v96
    %v161 = vadd.f32 %v160, %v97
    %v162 = vadd.f32 %v161, %v98
    %v163 = vadd.f32 %v162, %v99
    %v164 = vadd.f32 %v163, %v100
    %v165 = vadd.f32 %v164, %v101
    %v166 = vadd.f32 %v165, %v102
    %v167 = vadd.f32 %v166, %v103
    %v168 = vadd.f32 %v167, %v104
    %v169 = vadd.f32 %v168, %v105
    %v170 = vadd.f32 %v169, %v106
    %v171 = vadd.f32 %v170, %v107
    %v172 = vadd.f32 %v171, %v108
    %v173 = vadd.f32 %v172, %v109
    %v174 = vadd.f32 %v110, %v142
    %v175 = vadd.f32 %v111, %v173
    %176 = vst [vmem:[#allocation2] sm:$0xff] %v174
    %177 = vst [vmem:[#allocation2 + $0x8] sm:$0xff] %v175
    // Predicated region
    $region22: #{tpu_custom_call.1} parent=1 // pred_check
      %p178 = pneg %p40
    $region23: #{tpu_custom_call.1} parent=1 // pred_check_branch
      %180 = sbr.rel (%p178) target = $region25
    $region24: #{tpu_custom_call.1} parent=1 // pred_region
      %v181 = vld [vmem:[#allocation2] sm:$0xff]
      %v182 = vld [vmem:[#allocation2 + $0x8] sm:$0xff]
      %v183 = vrot.slane %v181, 4
      %v184 = vadd.f32 %v181, %v183
      %v185 = vrot.slane %v184, 2
      %v186 = vadd.f32 %v184, %v185
      %v187 = vrot.slane %v186, 1
      %v188 = vadd.f32 %v186, %v187
      %v189 = vrot.slane %v182, 4
      %v190 = vadd.f32 %v182, %v189
      %v191 = vrot.slane %v190, 2
      %v192 = vadd.f32 %v190, %v191
      %v193 = vrot.slane %v192, 1
      %v194 = vadd.f32 %v192, %v193
      %v195 = vld [vmem:[#allocation6] sm:$0xff]
      %v196 = vld [vmem:[#allocation6 + $0x8] sm:$0xff]
      %v197 = vld [vmem:[#allocation6 + $0x10] sm:$0xff]
      %v198 = vld [vmem:[#allocation6 + $0x18] sm:$0xff]
      %v199 = vld [vmem:[#allocation6 + $0x20] sm:$0xff]
      %v200 = vld [vmem:[#allocation6 + $0x28] sm:$0xff]
      %v201 = vld [vmem:[#allocation6 + $0x30] sm:$0xff]
      %v202 = vld [vmem:[#allocation6 + $0x38] sm:$0xff]
      %v203 = vld [vmem:[#allocation6 + $0x40] sm:$0xff]
      %v204 = vld [vmem:[#allocation6 + $0x48] sm:$0xff]
      %v205 = vld [vmem:[#allocation6 + $0x50] sm:$0xff]
      %v206 = vld [vmem:[#allocation6 + $0x58] sm:$0xff]
      %v207 = vld [vmem:[#allocation6 + $0x60] sm:$0xff]
      %v208 = vld [vmem:[#allocation6 + $0x68] sm:$0xff]
      %v209 = vld [vmem:[#allocation6 + $0x70] sm:$0xff]
      %v210 = vld [vmem:[#allocation6 + $0x78] sm:$0xff]
      %vm213 = vcmask 1041409
      %v214 = vsel %vm213, %v194, %v188
      %216 = vmatprep.subr.mxu0 0.0
      %217 = vmatpush1.xpose.msra.mxu0 %v195
      %218 = vmatprep.subr.mxu0 0.0
      %219 = vmatpush1.xpose.msra.mxu0 %v196
      %220 = vmatprep.subr.mxu0 0.0
      %221 = vmatpush1.xpose.msra.mxu0 %v197
      %222 = vmatprep.subr.mxu0 0.0
      %223 = vmatpush1.xpose.msra.mxu0 %v198
      %224 = vmatprep.subr.mxu0 0.0
      %225 = vmatpush1.xpose.msra.mxu0 %v199
      %226 = vmatprep.subr.mxu0 0.0
      %227 = vmatpush1.xpose.msra.mxu0 %v200
      %228 = vmatprep.subr.mxu0 0.0
      %229 = vmatpush1.xpose.msra.mxu0 %v201
      %230 = vmatprep.subr.mxu0 0.0
      %231 = vmatpush1.xpose.msra.mxu0 %v202
      %232 = vmatprep.subr.mxu0 0.0
      %233 = vmatpush1.xpose.msra.mxu0 %v203
      %234 = vmatprep.subr.mxu0 0.0
      %235 = vmatpush1.xpose.msra.mxu0 %v204
      %236 = vmatprep.subr.mxu0 0.0
      %237 = vmatpush1.xpose.msra.mxu0 %v205
      %238 = vmatprep.subr.mxu0 0.0
      %239 = vmatpush1.xpose.msra.mxu0 %v206
      %240 = vmatprep.subr.mxu0 0.0
      %241 = vmatpush1.xpose.msra.mxu0 %v207
      %242 = vmatprep.subr.mxu0 0.0
      %243 = vmatpush1.xpose.msra.mxu0 %v208
      %244 = vmatprep.subr.mxu0 0.0
      %245 = vmatpush1.xpose.msra.mxu0 %v209
      %246 = vmatprep.subr.mxu0 0.0
      %247 = vmatpush1.xpose.msra.mxu0 %v210
      %248 = vmatprep.subr.mxu0 0.0
      %249 = vmatpush1.xpose.msra.mxu0 0.0
      %250 = vmatprep.subr.mxu0 0.0
      %251 = vmatpush1.xpose.msra.mxu0 0.0
      %252 = vmatprep.subr.mxu0 0.0
      %253 = vmatpush1.xpose.msra.mxu0 0.0
      %254 = vmatprep.subr.mxu0 0.0
      %255 = vmatpush1.xpose.msra.mxu0 0.0
      %256 = vmatprep.subr.mxu0 0.0
      %257 = vmatpush1.xpose.msra.mxu0 0.0
      %258 = vmatprep.subr.mxu0 0.0
      %259 = vmatpush1.xpose.msra.mxu0 0.0
      %260 = vmatprep.subr.mxu0 0.0
      %261 = vmatpush1.xpose.msra.mxu0 0.0
      %262 = vmatprep.subr.mxu0 0.0
      %263 = vmatpush1.xpose.msra.mxu0 0.0
      %264 = vmatprep.subr.mxu0 0.0
      %265 = vmatpush1.xpose.msra.mxu0 0.0
      %266 = vmatprep.subr.mxu0 0.0
      %267 = vmatpush1.xpose.msra.mxu0 0.0
      %268 = vmatprep.subr.mxu0 0.0
      %269 = vmatpush1.xpose.msra.mxu0 0.0
      %270 = vmatprep.subr.mxu0 0.0
      %271 = vmatpush1.xpose.msra.mxu0 0.0
      %272 = vmatprep.subr.mxu0 0.0
      %273 = vmatpush1.xpose.msra.mxu0 0.0
      %274 = vmatprep.subr.mxu0 0.0
      %275 = vmatpush1.xpose.msra.mxu0 0.0
      %276 = vmatprep.subr.mxu0 0.0
      %277 = vmatpush1.xpose.msra.mxu0 0.0
      %278 = vmatprep.subr.mxu0 0.0
      %279 = vmatpush1.xpose.msra.mxu0 0.0
      %280 = vmatprep.mubr.f32.mxu0 0.0
      %281 = vmatmul.mubr.f32.gmra.mrb[0].mxu0 %v214
      %v282 = vpop.f32.mrb[0].mxu0
      %v283 = vadd.f32 0.0, %v282
      %v284 = vpop.f32.mrb[0].mxu0
      %285 = vdwg.mxu0
      %v286 = vmul.f32 %v283, 0.00390625
      %287 = vst [vmem:[#allocation8] sm:$0x3] %v286
    $region25: #{tpu_custom_call.1} parent=1 // pred_fallthru
      _
    // Predicated region
    $region26: #{tpu_custom_call.1} parent=1 // pred_check
      _
    $region27: #{tpu_custom_call.1} parent=1 // pred_check_branch
      %289 = sbr.rel (0) target = $region29
    $region28: #{tpu_custom_call.1} parent=1 // pred_region
      %s291 = ssub.s32 32, 32
      %292 = vsyncadd [#allocation5], %s291
      %s294 = sshll.u32 [#allocation8], 4
      %s295 = int_to_ptr.vmem [resolvable:$true] %s294
      %297 = dma.vmem_to_hbm [thread:$0]  %s295, 32, %s2, [#allocation5]
    $region29: #{tpu_custom_call.1} parent=1 // pred_fallthru
      _
    // Predicated region
    $region30: #{tpu_custom_call.1} parent=1 // pred_check
      _
    $region31: #{tpu_custom_call.1} parent=1 // pred_check_branch
      %299 = sbr.rel (0) target = $region33
    $region32: #{tpu_custom_call.1} parent=1 // pred_region
      %300 = dma.done [#allocation5], 32
    $region33: #{tpu_custom_call.1} parent=1 // pred_fallthru
      _
    %301 = vsyncpa [#allocation4], 1
    %302 = vsyncpa [#allocation7], 1
    %303 = vsyncpa [#allocation5], 1

</llo_original>
